<compile_context>
chip_gen: v6e
topology: v6e:2x2x1
jax: 0.10.0
libtpu: 0.0.40
codegen_flags: <defaults>
</compile_context>

<pallas_src>
import jax
import jax.numpy as jnp
from jax import lax
from jax.experimental import pallas as pl
from jax.experimental.pallas import tpu as pltpu


def _make_scf_kernel(H, W):
    N = H * W

    def kernel(x_ref, w1_ref, wpwa_ref, wpwb_ref, bnb_ref, w2_ref, o_ref):
        C1 = x_ref.shape[1]
        C2 = o_ref.shape[1]
        c1q = C1 // 4
        c2q = C2 // 4

        # Column (w) coordinate of every flattened pixel, for edge-masking the
        # dx = +/-1 taps.  The flat zero padding handles the dy edges for free.
        wcol = lax.broadcasted_iota(jnp.int32, (1, N), 1) % W
        not_left = wcol > 0            # pixel has a valid left neighbour  (dx = -1)
        not_right = wcol < (W - 1)     # pixel has a valid right neighbour (dx = +1)
        zero_bf = jnp.zeros((), jnp.bfloat16)

        def pconv3x3(src_bf16, w_bf16):
            # src_bf16: (Cq, N) bf16 slab; w_bf16: (Cq, 9*Cq) bf16.
            # 'same' 3x3 conv as a single im2col matmul, K = 9*Cq, N = H*W lane-dense.
            cq = src_bf16.shape[0]
            zpad = jnp.zeros((cq, W + 1), jnp.bfloat16)
            xpad = jnp.concatenate([zpad, src_bf16, zpad], axis=1)  # (Cq, N + 2W + 2)
            parts = []
            for t in range(9):
                dy, dx = t // 3 - 1, t % 3 - 1
                start = (W + 1) + dy * W + dx                       # static offset
                sh = xpad[:, start:start + N]                       # (Cq, N)
                if dx == -1:
                    sh = jnp.where(not_left, sh, zero_bf)
                elif dx == 1:
                    sh = jnp.where(not_right, sh, zero_bf)
                parts.append(sh)
            col = jnp.concatenate(parts, axis=0)                    # (9*Cq, N) bf16
            return jnp.dot(w_bf16, col, preferred_element_type=jnp.float32)

        x = x_ref[0]                                                # (C1, N) f32
        x_bf = x.astype(jnp.bfloat16)

        # pc: SC_conv3.forward_split_cat -- conv only the first C1/4 channels.
        y_a = pconv3x3(x_bf[:c1q], w1_ref[...])                     # (c1q, N) f32

        # pw: 1x1 conv (BN scale folded into the weights) + bias + SiLU.
        # K is split so the convolved / untouched channels never need a concat.
        z = (jnp.dot(wpwa_ref[...], y_a.astype(jnp.bfloat16),
                     preferred_element_type=jnp.float32)
             + jnp.dot(wpwb_ref[...], x_bf[c1q:],
                       preferred_element_type=jnp.float32)
             + bnb_ref[...])
        z = z * jax.nn.sigmoid(z)                                   # SiLU, (C2, N) f32

        # pc1: Partial_conv3.forward_split_cat -- conv only the first C2/4 channels;
        # the rest passes through in f32.  Both stores are sublane-aligned (c2q = 8)
        # and lane-dense, written straight into the output block (no concat copy).
        out_a = pconv3x3(z[:c2q].astype(jnp.bfloat16), w2_ref[...]) # (c2q, N) f32
        o_ref[0, :c2q, :] = out_a.astype(o_ref.dtype)
        o_ref[0, c2q:, :] = z[c2q:].astype(o_ref.dtype)

    return kernel


def scf_forward(x_nchw, w1, wpw_a, wpw_b, bn_bias_col, w2):
    """x_nchw: (B, C1, H, W) f32.  Returns (B, C2, H, W) f32."""
    B, C1, H, W = x_nchw.shape
    C2 = wpw_a.shape[0]
    N = H * W
    x = x_nchw.reshape(B, C1, N)          # NCHW -> (B, C, H*W): free, no transpose

    out = pl.pallas_call(
        _make_scf_kernel(H, W),
        out_shape=jax.ShapeDtypeStruct((B, C2, N), x.dtype),
        grid_spec=pltpu.PrefetchScalarGridSpec(
            num_scalar_prefetch=0,
            grid=(B,),
            in_specs=[
                pl.BlockSpec((1, C1, N), lambda b: (b, 0, 0)),
                pl.BlockSpec(w1.shape, lambda b: (0, 0)),
                pl.BlockSpec(wpw_a.shape, lambda b: (0, 0)),
                pl.BlockSpec(wpw_b.shape, lambda b: (0, 0)),
                pl.BlockSpec(bn_bias_col.shape, lambda b: (0, 0)),
                pl.BlockSpec(w2.shape, lambda b: (0, 0)),
            ],
            out_specs=pl.BlockSpec((1, C2, N), lambda b: (b, 0, 0)),
        ),
        compiler_params=pltpu.CompilerParams(
            dimension_semantics=("parallel",),
            vmem_limit_bytes=32 * 1024 * 1024,
        ),
    )(x, w1, wpw_a, wpw_b, bn_bias_col, w2)

    return out.reshape(B, C2, H, W)


# ---------------- parameter setup (deterministic, synthetic) ----------------

def _conv_to_col(w_oihw):
    """(cq, cq, 3, 3) OIHW -> (cq, 9*cq) with rows [c_out], cols [(ky*3+kx)*cq + c_in]."""
    cq = w_oihw.shape[0]
    return jnp.transpose(w_oihw, (0, 2, 3, 1)).reshape(cq, 9 * cq)


def make_params(key, c1, c2, eps=1e-3):
    c1q, c2q = c1 // 4, c2 // 4
    k1, k2, k3, k4, k5, k6, k7 = jax.random.split(key, 7)
    # PyTorch-shaped (OIHW), no bias (matches nn.Conv2d(..., bias=False))
    w_pc = 0.1 * jax.random.normal(k1, (c1q, c1q, 3, 3), jnp.float32)
    w_pw = 0.1 * jax.random.normal(k2, (c2, c1, 1, 1), jnp.float32)
    w_pc1 = 0.1 * jax.random.normal(k3, (c2q, c2q, 3, 3), jnp.float32)
    # BatchNorm2d(c2) params / running stats (eval mode, folded)
    gamma = 1.0 + 0.1 * jax.random.normal(k4, (c2,), jnp.float32)
    beta = 0.1 * jax.random.normal(k5, (c2,), jnp.float32)
    rmean = 0.1 * jax.random.normal(k6, (c2,), jnp.float32)
    rvar = jnp.abs(1.0 + 0.1 * jax.random.normal(k7, (c2,), jnp.float32))
    bn_scale = gamma / jnp.sqrt(rvar + eps)
    bn_bias = beta - rmean * bn_scale

    # Kernel-layout weights: bf16 MXU operands, BN scale folded into the 1x1 weights,
    # 1x1 weights split into [convolved-channel | untouched-channel] K blocks.
    w1 = _conv_to_col(w_pc).astype(jnp.bfloat16)                 # (c1q, 9*c1q)
    w2 = _conv_to_col(w_pc1).astype(jnp.bfloat16)                # (c2q, 9*c2q)
    w_pw_scaled = w_pw[:, :, 0, 0] * bn_scale[:, None]           # (c2, c1)
    wpw_a = w_pw_scaled[:, :c1q].astype(jnp.bfloat16)            # (c2, c1q)
    wpw_b = w_pw_scaled[:, c1q:].astype(jnp.bfloat16)            # (c2, c1 - c1q)
    bnb = bn_bias.reshape(c2, 1).astype(jnp.float32)             # (c2, 1)

    torch_like = dict(w_pc=w_pc, w_pw=w_pw, w_pc1=w_pc1,
                      bn_scale=bn_scale, bn_bias=bn_bias)
    kernel_params = (w1, wpw_a, wpw_b, bnb, w2)
    return kernel_params, torch_like


# ---------------- pure-JAX reference (mirrors PyTorch forward, BN in eval mode) -------
# TODO(synk): training-mode BatchNorm (batch statistics) is not implemented; BN is folded
# with running stats as in inference.

def scf_reference(x, p):
    dn = ('NCHW', 'OIHW', 'NCHW')
    c1 = x.shape[1]
    c1q = c1 // 4
    x0 = lax.conv_general_dilated(x[:, :c1q], p['w_pc'], (1, 1), ((1, 1), (1, 1)),
                                  dimension_numbers=dn)
    x = jnp.concatenate([x0, x[:, c1q:]], axis=1)
    z = lax.conv_general_dilated(x, p['w_pw'], (1, 1), 'VALID', dimension_numbers=dn)
    z = z * p['bn_scale'][None, :, None, None] + p['bn_bias'][None, :, None, None]
    z = z * jax.nn.sigmoid(z)
    c2 = z.shape[1]
    c2q = c2 // 4
    z0 = lax.conv_general_dilated(z[:, :c2q], p['w_pc1'], (1, 1), ((1, 1), (1, 1)),
                                  dimension_numbers=dn)
    return jnp.concatenate([z0, z[:, c2q:]], axis=1)


if __name__ == "__main__":
    B, C1, C2, H, W = 2, 16, 32, 16, 16
    key = jax.random.PRNGKey(0)
    kx, kp = jax.random.split(key)
    x = jax.random.normal(kx, (B, C1, H, W), jnp.float32)        # NCHW, like PyTorch

    kernel_params, torch_like = make_params(kp, C1, C2)

    out = jax.block_until_ready(scf_forward(x, *kernel_params))

    ref = jax.block_until_ready(scf_reference(x, torch_like))
    assert out.shape == (B, C2, H, W), out.shape
    # Tolerance sized for bf16 MXU operands (f32 accumulation) across three chained
    # matmul stages; a real tap/mask/fold bug produces errors >> 5e-2.
    max_err = float(jnp.max(jnp.abs(out - ref)))
    assert max_err < 5e-2, f"max abs error {max_err}"
    print("KERNEL_OK")
</pallas_src>

<mosaic_0001>
module attributes {stable_mosaic.version = 11 : i64} {
  func.func @kernel(%arg0: i32, %arg1: memref<1x16x256xf32, #tpu.memory_space<vmem>>, %arg2: memref<4x36xbf16, #tpu.memory_space<vmem>>, %arg3: memref<32x4xbf16, #tpu.memory_space<vmem>>, %arg4: memref<32x12xbf16, #tpu.memory_space<vmem>>, %arg5: memref<32x1xf32, #tpu.memory_space<vmem>>, %arg6: memref<8x72xbf16, #tpu.memory_space<vmem>>, %arg7: memref<1x32x256xf32, #tpu.memory_space<vmem>>) attributes {dimension_semantics = [#tpu.dimension_semantics<parallel>], iteration_bounds = array<i64: 2>, scalar_prefetch = 0 : i64, scratch_operands = 0 : i64, tpu.core_type = #tpu.core_type<tc>, window_params = [{transform_indices = @transform_0, window_bounds = array<i64: 1, 16, 256>}, {pipeline_mode = #tpu.pipeline_mode<synchronous>, transform_indices = @transform_1, window_bounds = array<i64: 4, 36>}, {pipeline_mode = #tpu.pipeline_mode<synchronous>, transform_indices = @transform_2, window_bounds = array<i64: 32, 4>}, {pipeline_mode = #tpu.pipeline_mode<synchronous>, transform_indices = @transform_3, window_bounds = array<i64: 32, 12>}, {pipeline_mode = #tpu.pipeline_mode<synchronous>, transform_indices = @transform_4, window_bounds = array<i64: 32, 1>}, {pipeline_mode = #tpu.pipeline_mode<synchronous>, transform_indices = @transform_5, window_bounds = array<i64: 8, 72>}, {transform_indices = @transform_6, window_bounds = array<i64: 1, 32, 256>}]} {
    %0 = tpu.iota {dimensions = array<i32: 1>} : vector<1x256xi32>
    %c16_i32 = arith.constant 16 : i32
    %c0_i32 = arith.constant 0 : i32
    %1 = arith.cmpi eq, %c16_i32, %c0_i32 : i32
    %c1_i32 = arith.constant 1 : i32
    %2 = arith.select %1, %c1_i32, %c16_i32 : i32
    %3 = vector.broadcast %2 : i32 to vector<1x256xi32>
    %4 = arith.remsi %0, %3 : vector<1x256xi32>
    %c0_i32_0 = arith.constant 0 : i32
    %5 = vector.broadcast %c0_i32_0 : i32 to vector<1x256xi32>
    %6 = arith.cmpi ne, %4, %5 : vector<1x256xi32>
    %c0_i32_1 = arith.constant 0 : i32
    %7 = vector.broadcast %c0_i32_1 : i32 to vector<1x256xi32>
    %8 = arith.cmpi slt, %4, %7 : vector<1x256xi32>
    %c0_i32_2 = arith.constant 0 : i32
    %9 = arith.cmpi slt, %2, %c0_i32_2 : i32
    %10 = vector.broadcast %9 : i1 to vector<1x256xi1>
    %11 = vector.broadcast %10 : vector<1x256xi1> to vector<1x256xi1>
    %12 = arith.xori %8, %11 : vector<1x256xi1>
    %13 = arith.andi %12, %6 : vector<1x256xi1>
    %14 = vector.broadcast %2 : i32 to vector<1x256xi32>
    %15 = arith.addi %4, %14 : vector<1x256xi32>
    %16 = arith.select %13, %15, %4 : vector<1x256xi1>, vector<1x256xi32>
    %c0_i32_3 = arith.constant 0 : i32
    %17 = vector.broadcast %c0_i32_3 : i32 to vector<1x256xi32>
    %18 = arith.cmpi sgt, %16, %17 : vector<1x256xi32>
    %c15_i32 = arith.constant 15 : i32
    %19 = vector.broadcast %c15_i32 : i32 to vector<1x256xi32>
    %20 = arith.cmpi slt, %16, %19 : vector<1x256xi32>
    %c0 = arith.constant 0 : index
    %c0_4 = arith.constant 0 : index
    %c0_5 = arith.constant 0 : index
    %21 = vector.load %arg1[%c0, %c0_4, %c0_5] : memref<1x16x256xf32, #tpu.memory_space<vmem>>, vector<1x16x256xf32>
    %22 = vector.shape_cast %21 : vector<1x16x256xf32> to vector<16x256xf32>
    %23 = arith.truncf %22 : vector<16x256xf32> to vector<16x256xbf16>
    %24 = vector.extract_strided_slice %23 {offsets = [0, 0], sizes = [4, 256], strides = [1, 1]} : vector<16x256xbf16> to vector<4x256xbf16>
    %c0_6 = arith.constant 0 : index
    %c0_7 = arith.constant 0 : index
    %25 = vector.load %arg2[%c0_6, %c0_7] : memref<4x36xbf16, #tpu.memory_space<vmem>>, vector<4x36xbf16>
    %cst = arith.constant 0.000000e+00 : bf16
    %26 = vector.broadcast %cst : bf16 to vector<4x17xbf16>
    %27 = tpu.concatenate %26, %24, %26 in 1 : vector<4x17xbf16>, vector<4x256xbf16>, vector<4x17xbf16> -> vector<4x290xbf16>
    %28 = vector.extract_strided_slice %27 {offsets = [0, 0], sizes = [4, 256], strides = [1, 1]} : vector<4x290xbf16> to vector<4x256xbf16>
    %cst_8 = arith.constant 0.000000e+00 : bf16
    %29 = vector.shape_cast %18 : vector<1x256xi1> to vector<1x256xi1>
    %30 = vector.broadcast %29 : vector<1x256xi1> to vector<4x256xi1>
    %31 = vector.broadcast %cst_8 : bf16 to vector<4x256xbf16>
    %32 = arith.select %30, %28, %31 : vector<4x256xi1>, vector<4x256xbf16>
    %33 = vector.extract_strided_slice %27 {offsets = [0, 1], sizes = [4, 256], strides = [1, 1]} : vector<4x290xbf16> to vector<4x256xbf16>
    %34 = vector.extract_strided_slice %27 {offsets = [0, 2], sizes = [4, 256], strides = [1, 1]} : vector<4x290xbf16> to vector<4x256xbf16>
    %cst_9 = arith.constant 0.000000e+00 : bf16
    %35 = vector.shape_cast %20 : vector<1x256xi1> to vector<1x256xi1>
    %36 = vector.broadcast %35 : vector<1x256xi1> to vector<4x256xi1>
    %37 = vector.broadcast %cst_9 : bf16 to vector<4x256xbf16>
    %38 = arith.select %36, %34, %37 : vector<4x256xi1>, vector<4x256xbf16>
    %39 = vector.extract_strided_slice %27 {offsets = [0, 16], sizes = [4, 256], strides = [1, 1]} : vector<4x290xbf16> to vector<4x256xbf16>
    %cst_10 = arith.constant 0.000000e+00 : bf16
    %40 = vector.shape_cast %18 : vector<1x256xi1> to vector<1x256xi1>
    %41 = vector.broadcast %40 : vector<1x256xi1> to vector<4x256xi1>
    %42 = vector.broadcast %cst_10 : bf16 to vector<4x256xbf16>
    %43 = arith.select %41, %39, %42 : vector<4x256xi1>, vector<4x256xbf16>
    %44 = vector.extract_strided_slice %27 {offsets = [0, 17], sizes = [4, 256], strides = [1, 1]} : vector<4x290xbf16> to vector<4x256xbf16>
    %45 = vector.extract_strided_slice %27 {offsets = [0, 18], sizes = [4, 256], strides = [1, 1]} : vector<4x290xbf16> to vector<4x256xbf16>
    %cst_11 = arith.constant 0.000000e+00 : bf16
    %46 = vector.shape_cast %20 : vector<1x256xi1> to vector<1x256xi1>
    %47 = vector.broadcast %46 : vector<1x256xi1> to vector<4x256xi1>
    %48 = vector.broadcast %cst_11 : bf16 to vector<4x256xbf16>
    %49 = arith.select %47, %45, %48 : vector<4x256xi1>, vector<4x256xbf16>
    %50 = vector.extract_strided_slice %27 {offsets = [0, 32], sizes = [4, 256], strides = [1, 1]} : vector<4x290xbf16> to vector<4x256xbf16>
    %cst_12 = arith.constant 0.000000e+00 : bf16
    %51 = vector.shape_cast %18 : vector<1x256xi1> to vector<1x256xi1>
    %52 = vector.broadcast %51 : vector<1x256xi1> to vector<4x256xi1>
    %53 = vector.broadcast %cst_12 : bf16 to vector<4x256xbf16>
    %54 = arith.select %52, %50, %53 : vector<4x256xi1>, vector<4x256xbf16>
    %55 = vector.extract_strided_slice %27 {offsets = [0, 33], sizes = [4, 256], strides = [1, 1]} : vector<4x290xbf16> to vector<4x256xbf16>
    %56 = vector.extract_strided_slice %27 {offsets = [0, 34], sizes = [4, 256], strides = [1, 1]} : vector<4x290xbf16> to vector<4x256xbf16>
    %cst_13 = arith.constant 0.000000e+00 : bf16
    %57 = vector.shape_cast %20 : vector<1x256xi1> to vector<1x256xi1>
    %58 = vector.broadcast %57 : vector<1x256xi1> to vector<4x256xi1>
    %59 = vector.broadcast %cst_13 : bf16 to vector<4x256xbf16>
    %60 = arith.select %58, %56, %59 : vector<4x256xi1>, vector<4x256xbf16>
    %61 = tpu.concatenate %32, %33, %38, %43, %44, %49, %54, %55, %60 in 0 : vector<4x256xbf16>, vector<4x256xbf16>, vector<4x256xbf16>, vector<4x256xbf16>, vector<4x256xbf16>, vector<4x256xbf16>, vector<4x256xbf16>, vector<4x256xbf16>, vector<4x256xbf16> -> vector<36x256xbf16>
    %cst_14 = arith.constant dense<0.000000e+00> : vector<4x256xf32>
    %62 = tpu.matmul %25, %61, %cst_14 {dimension_numbers = #tpu.dot_dimension_numbers<[1], [0], [0], [1], [0, 0, 1, 1], [], []>} : vector<4x36xbf16>, vector<36x256xbf16>, vector<4x256xf32> -> vector<4x256xf32>
    %c0_15 = arith.constant 0 : index
    %c0_16 = arith.constant 0 : index
    %63 = vector.load %arg3[%c0_15, %c0_16] : memref<32x4xbf16, #tpu.memory_space<vmem>>, vector<32x4xbf16>
    %64 = arith.truncf %62 : vector<4x256xf32> to vector<4x256xbf16>
    %cst_17 = arith.constant dense<0.000000e+00> : vector<32x256xf32>
    %65 = tpu.matmul %63, %64, %cst_17 {dimension_numbers = #tpu.dot_dimension_numbers<[1], [0], [0], [1], [0, 0, 1, 1], [], []>} : vector<32x4xbf16>, vector<4x256xbf16>, vector<32x256xf32> -> vector<32x256xf32>
    %c0_18 = arith.constant 0 : index
    %c0_19 = arith.constant 0 : index
    %66 = vector.load %arg4[%c0_18, %c0_19] : memref<32x12xbf16, #tpu.memory_space<vmem>>, vector<32x12xbf16>
    %67 = vector.extract_strided_slice %23 {offsets = [4, 0], sizes = [12, 256], strides = [1, 1]} : vector<16x256xbf16> to vector<12x256xbf16>
    %cst_20 = arith.constant dense<0.000000e+00> : vector<32x256xf32>
    %68 = tpu.matmul %66, %67, %cst_20 {dimension_numbers = #tpu.dot_dimension_numbers<[1], [0], [0], [1], [0, 0, 1, 1], [], []>} : vector<32x12xbf16>, vector<12x256xbf16>, vector<32x256xf32> -> vector<32x256xf32>
    %69 = arith.addf %65, %68 : vector<32x256xf32>
    %c0_21 = arith.constant 0 : index
    %c0_22 = arith.constant 0 : index
    %70 = vector.load %arg5[%c0_21, %c0_22] : memref<32x1xf32, #tpu.memory_space<vmem>>, vector<32x1xf32>
    %71 = vector.broadcast %70 : vector<32x1xf32> to vector<32x256xf32>
    %72 = arith.addf %69, %71 : vector<32x256xf32>
    %73 = arith.negf %72 : vector<32x256xf32>
    %74 = math.exp %73 : vector<32x256xf32>
    %cst_23 = arith.constant 1.000000e+00 : f32
    %75 = vector.broadcast %cst_23 : f32 to vector<32x256xf32>
    %76 = arith.addf %75, %74 : vector<32x256xf32>
    %77 = arith.divf %75, %76 : vector<32x256xf32>
    %78 = arith.mulf %72, %77 : vector<32x256xf32>
    %79 = vector.extract_strided_slice %78 {offsets = [0, 0], sizes = [8, 256], strides = [1, 1]} : vector<32x256xf32> to vector<8x256xf32>
    %80 = arith.truncf %79 : vector<8x256xf32> to vector<8x256xbf16>
    %c0_24 = arith.constant 0 : index
    %c0_25 = arith.constant 0 : index
    %81 = vector.load %arg6[%c0_24, %c0_25] : memref<8x72xbf16, #tpu.memory_space<vmem>>, vector<8x72xbf16>
    %cst_26 = arith.constant 0.000000e+00 : bf16
    %82 = vector.broadcast %cst_26 : bf16 to vector<8x17xbf16>
    %83 = tpu.concatenate %82, %80, %82 in 1 : vector<8x17xbf16>, vector<8x256xbf16>, vector<8x17xbf16> -> vector<8x290xbf16>
    %84 = vector.extract_strided_slice %83 {offsets = [0, 0], sizes = [8, 256], strides = [1, 1]} : vector<8x290xbf16> to vector<8x256xbf16>
    %cst_27 = arith.constant 0.000000e+00 : bf16
    %85 = vector.shape_cast %18 : vector<1x256xi1> to vector<1x256xi1>
    %86 = vector.broadcast %85 : vector<1x256xi1> to vector<8x256xi1>
    %87 = vector.broadcast %cst_27 : bf16 to vector<8x256xbf16>
    %88 = arith.select %86, %84, %87 : vector<8x256xi1>, vector<8x256xbf16>
    %89 = vector.extract_strided_slice %83 {offsets = [0, 1], sizes = [8, 256], strides = [1, 1]} : vector<8x290xbf16> to vector<8x256xbf16>
    %90 = vector.extract_strided_slice %83 {offsets = [0, 2], sizes = [8, 256], strides = [1, 1]} : vector<8x290xbf16> to vector<8x256xbf16>
    %cst_28 = arith.constant 0.000000e+00 : bf16
    %91 = vector.shape_cast %20 : vector<1x256xi1> to vector<1x256xi1>
    %92 = vector.broadcast %91 : vector<1x256xi1> to vector<8x256xi1>
    %93 = vector.broadcast %cst_28 : bf16 to vector<8x256xbf16>
    %94 = arith.select %92, %90, %93 : vector<8x256xi1>, vector<8x256xbf16>
    %95 = vector.extract_strided_slice %83 {offsets = [0, 16], sizes = [8, 256], strides = [1, 1]} : vector<8x290xbf16> to vector<8x256xbf16>
    %cst_29 = arith.constant 0.000000e+00 : bf16
    %96 = vector.shape_cast %18 : vector<1x256xi1> to vector<1x256xi1>
    %97 = vector.broadcast %96 : vector<1x256xi1> to vector<8x256xi1>
    %98 = vector.broadcast %cst_29 : bf16 to vector<8x256xbf16>
    %99 = arith.select %97, %95, %98 : vector<8x256xi1>, vector<8x256xbf16>
    %100 = vector.extract_strided_slice %83 {offsets = [0, 17], sizes = [8, 256], strides = [1, 1]} : vector<8x290xbf16> to vector<8x256xbf16>
    %101 = vector.extract_strided_slice %83 {offsets = [0, 18], sizes = [8, 256], strides = [1, 1]} : vector<8x290xbf16> to vector<8x256xbf16>
    %cst_30 = arith.constant 0.000000e+00 : bf16
    %102 = vector.shape_cast %20 : vector<1x256xi1> to vector<1x256xi1>
    %103 = vector.broadcast %102 : vector<1x256xi1> to vector<8x256xi1>
    %104 = vector.broadcast %cst_30 : bf16 to vector<8x256xbf16>
    %105 = arith.select %103, %101, %104 : vector<8x256xi1>, vector<8x256xbf16>
    %106 = vector.extract_strided_slice %83 {offsets = [0, 32], sizes = [8, 256], strides = [1, 1]} : vector<8x290xbf16> to vector<8x256xbf16>
    %cst_31 = arith.constant 0.000000e+00 : bf16
    %107 = vector.shape_cast %18 : vector<1x256xi1> to vector<1x256xi1>
    %108 = vector.broadcast %107 : vector<1x256xi1> to vector<8x256xi1>
    %109 = vector.broadcast %cst_31 : bf16 to vector<8x256xbf16>
    %110 = arith.select %108, %106, %109 : vector<8x256xi1>, vector<8x256xbf16>
    %111 = vector.extract_strided_slice %83 {offsets = [0, 33], sizes = [8, 256], strides = [1, 1]} : vector<8x290xbf16> to vector<8x256xbf16>
    %112 = vector.extract_strided_slice %83 {offsets = [0, 34], sizes = [8, 256], strides = [1, 1]} : vector<8x290xbf16> to vector<8x256xbf16>
    %cst_32 = arith.constant 0.000000e+00 : bf16
    %113 = vector.shape_cast %20 : vector<1x256xi1> to vector<1x256xi1>
    %114 = vector.broadcast %113 : vector<1x256xi1> to vector<8x256xi1>
    %115 = vector.broadcast %cst_32 : bf16 to vector<8x256xbf16>
    %116 = arith.select %114, %112, %115 : vector<8x256xi1>, vector<8x256xbf16>
    %117 = tpu.concatenate %88, %89, %94, %99, %100, %105, %110, %111, %116 in 0 : vector<8x256xbf16>, vector<8x256xbf16>, vector<8x256xbf16>, vector<8x256xbf16>, vector<8x256xbf16>, vector<8x256xbf16>, vector<8x256xbf16>, vector<8x256xbf16>, vector<8x256xbf16> -> vector<72x256xbf16>
    %cst_33 = arith.constant dense<0.000000e+00> : vector<8x256xf32>
    %118 = tpu.matmul %81, %117, %cst_33 {dimension_numbers = #tpu.dot_dimension_numbers<[1], [0], [0], [1], [0, 0, 1, 1], [], []>} : vector<8x72xbf16>, vector<72x256xbf16>, vector<8x256xf32> -> vector<8x256xf32>
    %c0_34 = arith.constant 0 : index
    %c0_35 = arith.constant 0 : index
    %c0_36 = arith.constant 0 : index
    %119 = vector.load %arg7[%c0_34, %c0_35, %c0_36] : memref<1x32x256xf32, #tpu.memory_space<vmem>>, vector<1x8x256xf32>
    %120 = vector.shape_cast %119 : vector<1x8x256xf32> to vector<8x256xf32>
    %121 = vector.shape_cast %118 : vector<8x256xf32> to vector<1x8x256xf32>
    tpu.vector_store %arg7[%c0_34, %c0_35, %c0_36], %121 {strides = array<i32>} : memref<1x32x256xf32, #tpu.memory_space<vmem>>, vector<1x8x256xf32>,
    %122 = vector.extract_strided_slice %78 {offsets = [8, 0], sizes = [24, 256], strides = [1, 1]} : vector<32x256xf32> to vector<24x256xf32>
    %c0_37 = arith.constant 0 : index
    %c8 = arith.constant 8 : index
    %c0_38 = arith.constant 0 : index
    %123 = vector.load %arg7[%c0_37, %c8, %c0_38] : memref<1x32x256xf32, #tpu.memory_space<vmem>>, vector<1x24x256xf32>
    %124 = vector.shape_cast %123 : vector<1x24x256xf32> to vector<24x256xf32>
    %125 = vector.shape_cast %122 : vector<24x256xf32> to vector<1x24x256xf32>
    tpu.vector_store %arg7[%c0_37, %c8, %c0_38], %125 {strides = array<i32>} : memref<1x32x256xf32, #tpu.memory_space<vmem>>, vector<1x24x256xf32>,
    return
  }
  func.func @transform_0(%arg0: i32) -> (i32, i32, i32) {
    %c0_i32 = arith.constant 0 : i32
    %c0_i32_0 = arith.constant 0 : i32
    %c0_i32_1 = arith.constant 0 : i32
    return %arg0, %c0_i32, %c0_i32_0 : i32, i32, i32
  }
  func.func @transform_1(%arg0: i32) -> (i32, i32) {
    %c0_i32 = arith.constant 0 : i32
    %c0_i32_0 = arith.constant 0 : i32
    %c0_i32_1 = arith.constant 0 : i32
    return %c0_i32, %c0_i32_0 : i32, i32
  }
  func.func @transform_2(%arg0: i32) -> (i32, i32) {
    %c0_i32 = arith.constant 0 : i32
    %c0_i32_0 = arith.constant 0 : i32
    %c0_i32_1 = arith.constant 0 : i32
    return %c0_i32, %c0_i32_0 : i32, i32
  }
  func.func @transform_3(%arg0: i32) -> (i32, i32) {
    %c0_i32 = arith.constant 0 : i32
    %c0_i32_0 = arith.constant 0 : i32
    %c0_i32_1 = arith.constant 0 : i32
    return %c0_i32, %c0_i32_0 : i32, i32
  }
  func.func @transform_4(%arg0: i32) -> (i32, i32) {
    %c0_i32 = arith.constant 0 : i32
    %c0_i32_0 = arith.constant 0 : i32
    %c0_i32_1 = arith.constant 0 : i32
    return %c0_i32, %c0_i32_0 : i32, i32
  }
  func.func @transform_5(%arg0: i32) -> (i32, i32) {
    %c0_i32 = arith.constant 0 : i32
    %c0_i32_0 = arith.constant 0 : i32
    %c0_i32_1 = arith.constant 0 : i32
    return %c0_i32, %c0_i32_0 : i32, i32
  }
  func.func @transform_6(%arg0: i32) -> (i32, i32, i32) {
    %c0_i32 = arith.constant 0 : i32
    %c0_i32_0 = arith.constant 0 : i32
    %c0_i32_1 = arith.constant 0 : i32
    return %arg0, %c0_i32, %c0_i32_0 : i32, i32, i32
  }
}

</mosaic_0001>

<llo_original>
// kernel: tpu_custom_call.1
$region0: #{tpu_custom_call.1}
  #allocation0 [shape = 'u32[]', space=smem, size = 0x4, offset = 0x4, fixed_abs, tag = 'smem constant byte address 0x4 - core index']
  #allocation1 [shape = 'u32[144,128]{1,0:T(1,128)}', space=vmem, size = 0x12000, scoped, tag = 'internal scratch']
  %s0 = inlined_call_operand.vmem [shape: f32[2,16,256], index: 0, kind: input, shape index: {}]
  %s1 = inlined_call_operand.hbm [shape: bf16[4,36], index: 1, kind: input, shape index: {}]
  %s2 = inlined_call_operand.vmem [shape: bf16[32,4], index: 2, kind: input, shape index: {}]
  %s3 = inlined_call_operand.vmem [shape: bf16[32,12], index: 3, kind: input, shape index: {}]
  %s4 = inlined_call_operand.vmem [shape: f32[32,1], index: 4, kind: input, shape index: {}]
  %s5 = inlined_call_operand.vmem [shape: bf16[8,72], index: 5, kind: input, shape index: {}]
  %s6 = inlined_call_operand.hbm [shape: f32[2,32,256], index: 6, kind: output, shape index: {}]
  %s7 = sld [smem:[#allocation0]]
  $region61: #{tpu_custom_call.1} parent=0
    _
  %s9 = ssub.s32 1, %s7
  %s10 = scalar_select 0, %s9, %s7
  $region1: #{tpu_custom_call.1} parent=0
    #allocation2 [shape = 'u8[1024]{0}', space=vmem, size = 0x400, scoped, tag = 'input window, operand 1, single buffered']
    #allocation3 [shape = 's32[2]{0}', space=sflag, size = 0x8, scoped, tag = 'scoped memory for tpu_custom_call.1']
    #allocation4 [shape = 's32[2]{0}', space=sflag, size = 0x8, scoped, tag = 'scoped memory for tpu_custom_call.1']
    #allocation5 [shape = 'u8[65536]{0}', space=vmem, size = 0x10000, scoped, tag = 'output window, operand 0']
    %11 = vsyncpa [#allocation3], 0
    %12 = vsyncpa [#allocation4], 0
    %s13 = scalar_lea.sflag [#allocation4], 1
    %14 = vsyncpa %s13, 0
    loop: start=0, step=1, limit=4
    $region2: #{tpu_custom_call.1} parent=1 // loop_pre_header
      _
    $region3: #{tpu_custom_call.1} parent=1 // loop_header
      %s16 = sphi 0, %s20
      %p17 = scmp.ge.s32.totalorder %s16, 4
      %s26 = sphi 0, %s28
      %s29 = sphi 0, %s26
      %s30 = sphi 0, %s29
      %s46 = sphi 0, %s30
      %s50 = sphi 0, %s50
      %s52 = sphi 0, %s50
      %s53 = sphi 0, %s52
      %s67 = sphi 0, %s53
      %s71 = sphi 0, %s71
      %s73 = sphi 0, %s71
      %s74 = sphi 0, %s73
      %s88 = sphi 0, %s74
      %s92 = sphi 0, %s92
      %s94 = sphi 0, %s92
      %s95 = sphi 0, %s94
      %s109 = sphi 0, %s95
      %s113 = sphi 0, %s113
      %s115 = sphi 0, %s113
      %s116 = sphi 0, %s115
      %s130 = sphi 0, %s116
      %s134 = sphi 0, %s134
      %s136 = sphi 0, %s134
      %s137 = sphi 0, %s136
      %s151 = sphi 0, %s137
      %s157 = sphi 0, %s159
      %s160 = sphi 0, %s157
      %s161 = sphi 0, %s160
      %s177 = sphi 0, %s161
    $region4: #{tpu_custom_call.1} parent=1 // loop_header_branch
      %19 = sbr.rel (%p17) target = $region8
    $region5: #{tpu_custom_call.1} parent=1 // loop_body
      %s21 = ssub.s32 %s16, 1
      %s22 = ssub.s32 %s16, 2
      %s23 = sadd.s32 %s16, 1
      %s24 = ssub.s32 %s16, %s23
      %p25 = scmp.eq.s32.totalorder %s24, 0
      %s27 = sadd.s32 %s26, 1
      %s28 = scalar_select %p25, %s26, %s27
      %p31 = pneg %p25
      %p32 = scmp.eq.s32.totalorder %s16, 1
      %p33 = por %p31, %p32
      %p34 = scmp.ne.s32.totalorder %s26, %s29
      %p35 = scmp.eq.s32.totalorder %s16, 0
      %p36 = por %p34, %p35
      %p37 = scmp.ne.s32.totalorder %s26, %s29
      %p38 = scmp.eq.s32.totalorder %s21, 1
      %p39 = por %p37, %p38
      %p40 = scmp.ne.s32.totalorder %s29, %s30
      %p41 = scmp.eq.s32.totalorder %s21, 0
      %p42 = por %p40, %p41
      %p43 = scmp.ne.s32.totalorder %s29, %s30
      %p44 = scmp.eq.s32.totalorder %s22, 1
      %p45 = por %p43, %p44
      %p47 = scmp.ne.s32.totalorder %s30, %s46
      %p48 = scmp.eq.s32.totalorder %s22, 0
      %p49 = por %p47, %p48
      %s51 = sadd.s32 %s50, 1
      %p54 = scmp.eq.s32.totalorder %s16, 1
      %p55 = scmp.ne.s32.totalorder %s50, %s52
      %p56 = scmp.eq.s32.totalorder %s16, 0
      %p57 = por %p55, %p56
      %p58 = scmp.ne.s32.totalorder %s50, %s52
      %p59 = scmp.eq.s32.totalorder %s21, 1
      %p60 = por %p58, %p59
      %p61 = scmp.ne.s32.totalorder %s52, %s53
      %p62 = scmp.eq.s32.totalorder %s21, 0
      %p63 = por %p61, %p62
      %p64 = scmp.ne.s32.totalorder %s52, %s53
      %p65 = scmp.eq.s32.totalorder %s22, 1
      %p66 = por %p64, %p65
      %p68 = scmp.ne.s32.totalorder %s53, %s67
      %p69 = scmp.eq.s32.totalorder %s22, 0
      %p70 = por %p68, %p69
      %s72 = sadd.s32 %s71, 1
      %p75 = scmp.eq.s32.totalorder %s16, 1
      %p76 = scmp.ne.s32.totalorder %s71, %s73
      %p77 = scmp.eq.s32.totalorder %s16, 0
      %p78 = por %p76, %p77
      %p79 = scmp.ne.s32.totalorder %s71, %s73
      %p80 = scmp.eq.s32.totalorder %s21, 1
      %p81 = por %p79, %p80
      %p82 = scmp.ne.s32.totalorder %s73, %s74
      %p83 = scmp.eq.s32.totalorder %s21, 0
      %p84 = por %p82, %p83
      %p85 = scmp.ne.s32.totalorder %s73, %s74
      %p86 = scmp.eq.s32.totalorder %s22, 1
      %p87 = por %p85, %p86
      %p89 = scmp.ne.s32.totalorder %s74, %s88
      %p90 = scmp.eq.s32.totalorder %s22, 0
      %p91 = por %p89, %p90
      %s93 = sadd.s32 %s92, 1
      %p96 = scmp.eq.s32.totalorder %s16, 1
      %p97 = scmp.ne.s32.totalorder %s92, %s94
      %p98 = scmp.eq.s32.totalorder %s16, 0
      %p99 = por %p97, %p98
      %p100 = scmp.ne.s32.totalorder %s92, %s94
      %p101 = scmp.eq.s32.totalorder %s21, 1
      %p102 = por %p100, %p101
      %p103 = scmp.ne.s32.totalorder %s94, %s95
      %p104 = scmp.eq.s32.totalorder %s21, 0
      %p105 = por %p103, %p104
      %p106 = scmp.ne.s32.totalorder %s94, %s95
      %p107 = scmp.eq.s32.totalorder %s22, 1
      %p108 = por %p106, %p107
      %p110 = scmp.ne.s32.totalorder %s95, %s109
      %p111 = scmp.eq.s32.totalorder %s22, 0
      %p112 = por %p110, %p111
      %s114 = sadd.s32 %s113, 1
      %p117 = scmp.eq.s32.totalorder %s16, 1
      %p118 = scmp.ne.s32.totalorder %s113, %s115
      %p119 = scmp.eq.s32.totalorder %s16, 0
      %p120 = por %p118, %p119
      %p121 = scmp.ne.s32.totalorder %s113, %s115
      %p122 = scmp.eq.s32.totalorder %s21, 1
      %p123 = por %p121, %p122
      %p124 = scmp.ne.s32.totalorder %s115, %s116
      %p125 = scmp.eq.s32.totalorder %s21, 0
      %p126 = por %p124, %p125
      %p127 = scmp.ne.s32.totalorder %s115, %s116
      %p128 = scmp.eq.s32.totalorder %s22, 1
      %p129 = por %p127, %p128
      %p131 = scmp.ne.s32.totalorder %s116, %s130
      %p132 = scmp.eq.s32.totalorder %s22, 0
      %p133 = por %p131, %p132
      %s135 = sadd.s32 %s134, 1
      %p138 = scmp.eq.s32.totalorder %s16, 1
      %p139 = scmp.ne.s32.totalorder %s134, %s136
      %p140 = scmp.eq.s32.totalorder %s16, 0
      %p141 = por %p139, %p140
      %p142 = scmp.ne.s32.totalorder %s134, %s136
      %p143 = scmp.eq.s32.totalorder %s21, 1
      %p144 = por %p142, %p143
      %p145 = scmp.ne.s32.totalorder %s136, %s137
      %p146 = scmp.eq.s32.totalorder %s21, 0
      %p147 = por %p145, %p146
      %p148 = scmp.ne.s32.totalorder %s136, %s137
      %p149 = scmp.eq.s32.totalorder %s22, 1
      %p150 = por %p148, %p149
      %p152 = scmp.ne.s32.totalorder %s137, %s151
      %p153 = scmp.eq.s32.totalorder %s22, 0
      %p154 = por %p152, %p153
      %s155 = ssub.s32 %s16, %s23
      %p156 = scmp.eq.s32.totalorder %s155, 0
      %s158 = sadd.s32 %s157, 1
      %s159 = scalar_select %p156, %s157, %s158
      %p162 = pneg %p156
      %p163 = scmp.eq.s32.totalorder %s16, 1
      %p164 = por %p162, %p163
      %p165 = scmp.ne.s32.totalorder %s157, %s160
      %p166 = scmp.eq.s32.totalorder %s16, 0
      %p167 = por %p165, %p166
      %p168 = scmp.ne.s32.totalorder %s157, %s160
      %p169 = scmp.eq.s32.totalorder %s21, 1
      %p170 = por %p168, %p169
      %p171 = scmp.ne.s32.totalorder %s160, %s161
      %p172 = scmp.eq.s32.totalorder %s21, 0
      %p173 = por %p171, %p172
      %p174 = scmp.ne.s32.totalorder %s160, %s161
      %p175 = scmp.eq.s32.totalorder %s22, 1
      %p176 = por %p174, %p175
      %p178 = scmp.ne.s32.totalorder %s161, %s177
      %p179 = scmp.eq.s32.totalorder %s22, 0
      %p180 = por %p178, %p179
      %p181 = scmp.le.s32.totalorder 1, %s16
      %p182 = scmp.lt.s32.totalorder %s16, 3
      %p183 = pnand %p181, %p182
      %p184 = pneg %p183
      // Predicated region
      $region9: #{tpu_custom_call.1} parent=5 // pred_check
        _
      $region10: #{tpu_custom_call.1} parent=5 // pred_check_branch
        %186 = sbr.rel (%p183) target = $region12
      $region11: #{tpu_custom_call.1} parent=5 // pred_region
        %s187 = ssub.s32 %s16, 1
        // Predicated region
        $region13: #{tpu_custom_call.1} parent=11 // pred_check
          %p188 = pneg %p63
        $region14: #{tpu_custom_call.1} parent=11 // pred_check_branch
          %190 = sbr.rel (%p188) target = $region16
        $region15: #{tpu_custom_call.1} parent=11 // pred_region
          %s192 = ssub.s32 32, 32
          %193 = vsyncadd [#allocation3], %s192
          %s195 = sshll.u32 [#allocation2], 4
          %s196 = int_to_ptr.vmem [resolvable:$true] %s195
          %198 = dma.hbm_to_vmem [thread:$0]  %s1, 32, %s196, [#allocation3]
        $region16: #{tpu_custom_call.1} parent=11 // pred_fallthru
          _
        // Predicated region
        $region17: #{tpu_custom_call.1} parent=11 // pred_check
          %p199 = pneg %p84
        $region18: #{tpu_custom_call.1} parent=11 // pred_check_branch
          %201 = sbr.rel (%p199) target = $region20
        $region19: #{tpu_custom_call.1} parent=11 // pred_region
          _
        $region20: #{tpu_custom_call.1} parent=11 // pred_fallthru
          _
        // Predicated region
        $region21: #{tpu_custom_call.1} parent=11 // pred_check
          %p202 = pneg %p105
        $region22: #{tpu_custom_call.1} parent=11 // pred_check_branch
          %204 = sbr.rel (%p202) target = $region24
        $region23: #{tpu_custom_call.1} parent=11 // pred_region
          _
        $region24: #{tpu_custom_call.1} parent=11 // pred_fallthru
          _
        // Predicated region
        $region25: #{tpu_custom_call.1} parent=11 // pred_check
          %p205 = pneg %p126
        $region26: #{tpu_custom_call.1} parent=11 // pred_check_branch
          %207 = sbr.rel (%p205) target = $region28
        $region27: #{tpu_custom_call.1} parent=11 // pred_region
          _
        $region28: #{tpu_custom_call.1} parent=11 // pred_fallthru
          _
        // Predicated region
        $region29: #{tpu_custom_call.1} parent=11 // pred_check
          %p208 = pneg %p147
        $region30: #{tpu_custom_call.1} parent=11 // pred_check_branch
          %210 = sbr.rel (%p208) target = $region32
        $region31: #{tpu_custom_call.1} parent=11 // pred_region
          _
        $region32: #{tpu_custom_call.1} parent=11 // pred_fallthru
          _
      $region12: #{tpu_custom_call.1} parent=5 // pred_fallthru
        _
      %p211 = scmp.lt.s32.totalorder %s16, 2
      // Predicated region
      $region33: #{tpu_custom_call.1} parent=5 // pred_check
        %p212 = pneg %p211
      $region34: #{tpu_custom_call.1} parent=5 // pred_check_branch
        %214 = sbr.rel (%p212) target = $region36
      $region35: #{tpu_custom_call.1} parent=5 // pred_region
        // Predicated region
        $region37: #{tpu_custom_call.1} parent=35 // pred_check
          %p215 = pneg %p36
        $region38: #{tpu_custom_call.1} parent=35 // pred_check_branch
          %217 = sbr.rel (%p215) target = $region40
        $region39: #{tpu_custom_call.1} parent=35 // pred_region
          %p218 = scmp.lt.s32.totalorder %s16, 1
          %s219 = scalar_select %p218, %s16, 1
          %s220 = smul.addr %s219, 4
          %s221 = smul.addr %s220, 8
          %s222 = scalar_lea.vmem %s0, %s221
        $region40: #{tpu_custom_call.1} parent=35 // pred_fallthru
          _
      $region36: #{tpu_custom_call.1} parent=5 // pred_fallthru
        _
      %p223 = scmp.le.s32.totalorder 1, %s16
      %p224 = scmp.lt.s32.totalorder %s16, 3
      %p225 = pnand %p223, %p224
      %p226 = pneg %p225
      // Predicated region
      $region41: #{tpu_custom_call.1} parent=5 // pred_check
        _
      $region42: #{tpu_custom_call.1} parent=5 // pred_check_branch
        %228 = sbr.rel (%p225) target = $region44
      $region43: #{tpu_custom_call.1} parent=5 // pred_region
        %s229 = ssub.s32 %s16, 1
        // Predicated region
        $region45: #{tpu_custom_call.1} parent=43 // pred_check
          %p230 = pneg %p63
        $region46: #{tpu_custom_call.1} parent=43 // pred_check_branch
          %232 = sbr.rel (%p230) target = $region48
        $region47: #{tpu_custom_call.1} parent=43 // pred_region
          %233 = dma.done [#allocation3], 32
        $region48: #{tpu_custom_call.1} parent=43 // pred_fallthru
          _
        %p234 = scmp.lt.s32.totalorder %s21, 1
        %s235 = scalar_select %p234, %s21, 1
        %s236 = smul.addr %s235, 4
        %s237 = smul.addr %s236, 8
        %s238 = scalar_lea.vmem %s0, %s237
        %p239 = pneg %p42
        %p240 = pneg %p39
        %p241 = pneg %p63
        %p242 = pneg %p60
        %p243 = pneg %p84
        %p244 = pneg %p81
        %p245 = pneg %p105
        %p246 = pneg %p102
        %p247 = pneg %p126
        %p248 = pneg %p123
        %p249 = pneg %p147
        %p250 = pneg %p144
        %p251 = pneg %p173
        %p252 = pneg %p170
        %s253 = sand.u32 %s160, 1
        %s254 = scalar_lea.sflag [#allocation4], %s253
        %s255 = sand.u32 %s160, 1
        %s256 = smul.addr %s255, 64
        %s257 = scalar_lea.vmem [#allocation5], %s256
        %p258 = scmp.lt.s32.totalorder %s21, 1
        %s259 = scalar_select %p258, %s21, 1
        %s260 = smul.addr %s259, 4
        %s261 = smul.addr %s260, 8
        %s262 = scalar_lea.vmem %s0, %s261
        %v266 = vlaneseq
        %v267 = vand.u32 %v266, 127
        %v268 = vadd.s32 %v267, 128
        %vm269 = vcmp.lt.s32.totalorder %v267, 0
        %v270 = vsub.s32 0, %v267
        %v271 = vsel %vm269, %v270, %v267
        %v272 = vshrl.u32 %v271, 4
        %v273 = vand.u32 %v271, 15
        %v274 = vsub.s32 0, %v273
        %v275 = vsel %vm269, %v274, %v273
        %vm276 = vcmp.lt.s32.totalorder %v268, 0
        %v277 = vsub.s32 0, %v268
        %v278 = vsel %vm276, %v277, %v268
        %v279 = vshrl.u32 %v278, 4
        %v280 = vand.u32 %v278, 15
        %v281 = vsub.s32 0, %v280
        %v282 = vsel %vm276, %v281, %v280
        %vm283 = vcmp.ne.s32.totalorder %v275, 0
        %vm284 = vcmp.ne.s32.totalorder %v282, 0
        %vm285 = vcmp.lt.s32.totalorder %v275, 0
        %vm286 = vcmp.lt.s32.totalorder %v282, 0
        %vm287 = vmand %vm285, %vm283
        %vm288 = vmand %vm286, %vm284
        %v289 = vadd.s32 %v275, 16
        %v290 = vadd.s32 %v282, 16
        %v291 = vsel %vm287, %v289, %v275
        %v292 = vsel %vm288, %v290, %v282
        %vm293 = vcmp.gt.s32.totalorder %v291, 0
        %vm294 = vcmp.gt.s32.totalorder %v292, 0
        %vm295 = vcmp.lt.s32.totalorder %v291, 15
        %vm296 = vcmp.lt.s32.totalorder %v292, 15
        %v297 = vld [vmem:[%s262] sm:$0xff]
        %v298 = vld [vmem:[%s262 + $0x8] sm:$0xff]
        %v299 = vld [vmem:[%s262 + $0x10] sm:$0xff]
        %v300 = vld [vmem:[%s262 + $0x18] sm:$0xff]
        %v301 = vpack.c.bf16 %v299, %v297
        %v302 = vpack.c.bf16 %v300, %v298
        %v303 = vld [vmem:[#allocation2] sm:$0x3]
        %306 = vrot.lane.b32.xlu0 %v301, 17
        %v307 = vpop.permute.xlu0 %306
        %308 = vrot.lane.b32.xlu0 %v302, 17
        %v309 = vpop.permute.xlu0 %308
        %vm310 = vcmask 138240
        %v311 = vsel %vm310, %v307, %v309
        %vm313 = vcmask 138240
        %v316 = vsel %vm313, 0, %v307
        %v319 = vsel %vm313, %v309, 0
        %v321 = vsel %vm293, 1, 0
        %v322 = vsel %vm294, 1, 0
        %vm323 = vcmp.eq.s32.totalorder %v321, 1
        %vm324 = vcmp.eq.s32.totalorder %v322, 1
        %vm325 = vmpackc.low %vm324, %vm323
        %v326 = vsel %vm325, 65537, 0
        %v327 = vlaneseq
        %v328 = vshrl.u32 %v327, 7
        %v329 = vsub.s32 0, %v328
        %v330 = vrot.slane %v326, %v329
        %v331 = vlaneseq
        %v332 = vshrl.u32 %v331, 7
        %v333 = vsub.s32 4, %v332
        %v334 = vrot.slane %v326, %v333
        %vm335 = vcmp.ne.s16.totalorder %v330, 0
        %vm336 = vcmp.ne.s16.totalorder %v334, 0
        %v337 = vsel %vm335, %v316, 0
        %v338 = vsel %vm336, %v311, 0
        %v339 = vsel %vm295, 1, 0
        %v340 = vsel %vm296, 1, 0
        %vm341 = vcmp.eq.s32.totalorder %v339, 1
        %vm342 = vcmp.eq.s32.totalorder %v340, 1
        %vm343 = vmpackc.low %vm342, %vm341
        %v344 = vsel %vm343, 65537, 0
        %v345 = vlaneseq
        %v346 = vshrl.u32 %v345, 7
        %v347 = vsub.s32 0, %v346
        %v348 = vrot.slane %v344, %v347
        %v349 = vlaneseq
        %v350 = vshrl.u32 %v349, 7
        %v351 = vsub.s32 4, %v350
        %v352 = vrot.slane %v344, %v351
        %353 = vrot.lane.b32.xlu0 %v348, 2
        %v354 = vpop.permute.xlu0 %353
        %355 = vrot.lane.b32.xlu0 %v352, 2
        %v356 = vpop.permute.xlu0 %355
        %vm357 = vcmask 15360
        %v358 = vsel %vm357, %v354, %v356
        %vm359 = vcmp.ne.s16.totalorder %v354, 0
        %vm360 = vcmp.ne.s16.totalorder %v358, 0
        %vm361 = vcmp.ne.s16.totalorder %v356, 0
        %v362 = vsel %vm359, %v316, 0
        %v363 = vsel %vm360, %v311, 0
        %v364 = vsel %vm361, %v319, 0
        %365 = vrot.lane.b32.xlu0 %v330, 16
        %v366 = vpop.permute.xlu0 %365
        %367 = vrot.lane.b32.xlu0 %v334, 16
        %v368 = vpop.permute.xlu0 %367
        %vm369 = vcmask 130048
        %v370 = vsel %vm369, %v366, %v368
        %vm371 = vcmp.ne.s16.totalorder %v366, 0
        %vm372 = vcmp.ne.s16.totalorder %v370, 0
        %vm373 = vcmp.ne.s16.totalorder %v368, 0
        %v374 = vsel %vm371, %v316, 0
        %v375 = vsel %vm372, %v311, 0
        %v376 = vsel %vm373, %v319, 0
        %377 = vrot.lane.b32.xlu0 %v348, 18
        %v378 = vpop.permute.xlu0 %377
        %379 = vrot.lane.b32.xlu0 %v352, 18
        %v380 = vpop.permute.xlu0 %379
        %vm381 = vcmask 146432
        %v382 = vsel %vm381, %v378, %v380
        %vm383 = vcmp.ne.s16.totalorder %v378, 0
        %vm384 = vcmp.ne.s16.totalorder %v382, 0
        %vm385 = vcmp.ne.s16.totalorder %v380, 0
        %v386 = vsel %vm383, %v316, 0
        %v387 = vsel %vm384, %v311, 0
        %v388 = vsel %vm385, %v319, 0
        %389 = vrot.lane.b32.xlu0 %v330, 32
        %v390 = vpop.permute.xlu0 %389
        %391 = vrot.lane.b32.xlu0 %v334, 32
        %v392 = vpop.permute.xlu0 %391
        %vm393 = vcmask 261120
        %v394 = vsel %vm393, %v390, %v392
        %vm395 = vcmp.ne.s16.totalorder %v390, 0
        %vm396 = vcmp.ne.s16.totalorder %v394, 0
        %vm397 = vcmp.ne.s16.totalorder %v392, 0
        %v398 = vsel %vm395, %v316, 0
        %v399 = vsel %vm396, %v311, 0
        %v400 = vsel %vm397, %v319, 0
        %401 = vrot.lane.b32.xlu0 %v348, 34
        %v402 = vpop.permute.xlu0 %401
        %403 = vrot.lane.b32.xlu0 %v352, 34
        %v404 = vpop.permute.xlu0 %403
        %vm405 = vcmask 277504
        %v406 = vsel %vm405, %v402, %v404
        %vm407 = vcmp.ne.s16.totalorder %v402, 0
        %vm408 = vcmp.ne.s16.totalorder %v406, 0
        %vm409 = vcmp.ne.s16.totalorder %v404, 0
        %v410 = vsel %vm407, %v316, 0
        %v411 = vsel %vm408, %v311, 0
        %v412 = vsel %vm409, %v319, 0
        %v415 = vrot.slane %v316, 6
        %v416 = vrot.slane %v311, 6
        %v417 = vrot.slane %v319, 6
        %418 = vrot.lane.b32.xlu0 %v415, 127
        %v419 = vpop.permute.xlu0 %418
        %420 = vrot.lane.b32.xlu0 %v416, 127
        %v421 = vpop.permute.xlu0 %420
        %422 = vrot.lane.b32.xlu0 %v417, 127
        %v423 = vpop.permute.xlu0 %422
        %vm424 = vcmask 1039360
        %v425 = vsel %vm424, %v419, %v421
        %v426 = vsel %vm424, %v421, %v423
        %v430 = vrot.slane %v362, 4
        %v431 = vrot.slane %v363, 4
        %v432 = vrot.slane %v364, 4
        %433 = vrot.lane.b32.xlu0 %v430, 126
        %v434 = vpop.permute.xlu0 %433
        %435 = vrot.lane.b32.xlu0 %v431, 126
        %v436 = vpop.permute.xlu0 %435
        %437 = vrot.lane.b32.xlu0 %v432, 126
        %v438 = vpop.permute.xlu0 %437
        %vm439 = vcmask 1031168
        %v440 = vsel %vm439, %v434, %v436
        %v441 = vsel %vm439, %v436, %v438
        %v445 = vrot.slane %v374, 2
        %v446 = vrot.slane %v375, 2
        %v447 = vrot.slane %v376, 2
        %448 = vrot.lane.b32.xlu0 %v445, 112
        %v449 = vpop.permute.xlu0 %448
        %450 = vrot.lane.b32.xlu0 %v446, 112
        %v451 = vpop.permute.xlu0 %450
        %452 = vrot.lane.b32.xlu0 %v447, 112
        %v453 = vpop.permute.xlu0 %452
        %vm454 = vcmask 916480
        %v455 = vsel %vm454, %v449, %v451
        %v456 = vsel %vm454, %v451, %v453
        %457 = vrot.lane.b32.xlu0 %v316, 111
        %v458 = vpop.permute.xlu0 %457
        %459 = vrot.lane.b32.xlu0 %v311, 111
        %v460 = vpop.permute.xlu0 %459
        %461 = vrot.lane.b32.xlu0 %v319, 111
        %v462 = vpop.permute.xlu0 %461
        %vm463 = vcmask 908288
        %v464 = vsel %vm463, %v458, %v460
        %v465 = vsel %vm463, %v460, %v462
        %v469 = vrot.slane %v386, 6
        %v470 = vrot.slane %v387, 6
        %v471 = vrot.slane %v388, 6
        %472 = vrot.lane.b32.xlu0 %v469, 110
        %v473 = vpop.permute.xlu0 %472
        %474 = vrot.lane.b32.xlu0 %v470, 110
        %v475 = vpop.permute.xlu0 %474
        %476 = vrot.lane.b32.xlu0 %v471, 110
        %v477 = vpop.permute.xlu0 %476
        %vm478 = vcmask 900096
        %v479 = vsel %vm478, %v473, %v475
        %v480 = vsel %vm478, %v475, %v477
        %v484 = vrot.slane %v398, 4
        %v485 = vrot.slane %v399, 4
        %v486 = vrot.slane %v400, 4
        %487 = vrot.lane.b32.xlu0 %v484, 96
        %v488 = vpop.permute.xlu0 %487
        %489 = vrot.lane.b32.xlu0 %v485, 96
        %v490 = vpop.permute.xlu0 %489
        %491 = vrot.lane.b32.xlu0 %v486, 96
        %v492 = vpop.permute.xlu0 %491
        %vm493 = vcmask 785408
        %v494 = vsel %vm493, %v488, %v490
        %v495 = vsel %vm493, %v490, %v492
        %v496 = vrot.slane %v316, 2
        %v497 = vrot.slane %v311, 2
        %v498 = vrot.slane %v319, 2
        %499 = vrot.lane.b32.xlu0 %v496, 95
        %v500 = vpop.permute.xlu0 %499
        %501 = vrot.lane.b32.xlu0 %v497, 95
        %v502 = vpop.permute.xlu0 %501
        %503 = vrot.lane.b32.xlu0 %v498, 95
        %v504 = vpop.permute.xlu0 %503
        %vm505 = vcmask 777216
        %v506 = vsel %vm505, %v500, %v502
        %v507 = vsel %vm505, %v502, %v504
        %511 = vrot.lane.b32.xlu0 %v410, 94
        %v512 = vpop.permute.xlu0 %511
        %513 = vrot.lane.b32.xlu0 %v411, 94
        %v514 = vpop.permute.xlu0 %513
        %515 = vrot.lane.b32.xlu0 %v412, 94
        %v516 = vpop.permute.xlu0 %515
        %vm517 = vcmask 769024
        %v518 = vsel %vm517, %v512, %v514
        %v519 = vsel %vm517, %v514, %v516
        %vm520 = vcmask 1041408
        %v523 = vsel %vm520, %v337, %v425
        %v526 = vsel %vm520, %v338, %v426
        %vm527 = vcmask 1043456
        %v529 = vsel %vm527, %v523, %v440
        %v531 = vsel %vm527, %v526, %v441
        %vm532 = vcmask 1045504
        %v534 = vsel %vm532, %v529, %v455
        %v537 = vsel %vm532, %v531, %v456
        %v541 = vsel %vm520, %v464, %v479
        %v544 = vsel %vm520, %v465, %v480
        %v546 = vsel %vm527, %v541, %v494
        %v548 = vsel %vm527, %v544, %v495
        %v550 = vsel %vm532, %v546, %v506
        %v553 = vsel %vm532, %v548, %v507
        %vm555 = vcmask 293888
        %v557 = vsel %vm555, %v303, 0
        %v560 = vsel %vm520, %v518, 0
        %v563 = vsel %vm520, %v519, 0
        %565 = vmatprep.subr.bf16.mxu0 0
        %566 = vmatpush1.bf16.msra.mxu0 0
        %567 = vmatprep.subr.bf16.mxu0 0
        %568 = vmatpush1.bf16.msra.mxu0 0
        %569 = vmatprep.subr.bf16.mxu0 0
        %570 = vmatpush1.bf16.msra.mxu0 0
        %571 = vmatprep.subr.bf16.mxu0 0
        %572 = vmatpush1.bf16.msra.mxu0 0
        %573 = vmatprep.subr.bf16.mxu0 0
        %574 = vmatpush1.bf16.msra.mxu0 0
        %575 = vmatprep.subr.bf16.mxu0 %v563
        %576 = vmatpush1.bf16.msra.mxu0 %v560
        %577 = vmatprep.subr.bf16.mxu0 %v553
        %578 = vmatpush1.bf16.msra.mxu0 %v550
        %579 = vmatprep.subr.bf16.mxu0 %v537
        %580 = vmatpush1.bf16.msra.mxu0 %v534
        %581 = vmatprep.subr.bf16.mxu0 0
        %582 = vmatpush2.bf16.msra.mxu0 0
        %583 = vmatprep.subr.bf16.mxu0 0
        %584 = vmatpush2.bf16.msra.mxu0 0
        %585 = vmatprep.subr.bf16.mxu0 0
        %586 = vmatpush2.bf16.msra.mxu0 0
        %587 = vmatprep.subr.bf16.mxu0 0
        %588 = vmatpush2.bf16.msra.mxu0 0
        %589 = vmatprep.subr.bf16.mxu0 0
        %590 = vmatpush2.bf16.msra.mxu0 0
        %591 = vmatprep.subr.bf16.mxu0 0
        %592 = vmatpush2.bf16.msra.mxu0 0
        %593 = vmatprep.subr.bf16.mxu0 0
        %594 = vmatpush2.bf16.msra.mxu0 0
        %595 = vmatprep.subr.bf16.mxu0 0
        %596 = vmatpush2.bf16.msra.mxu0 0
        %597 = vmatprep.mubr.bf16.mxu0 0
        %598 = vmatmul.mubr.bf16.gmra.mxu0 %v557
        %v599 = vpop.f32.mrf.mxu0
        %v600 = vadd.f32 0.0, %v599
        %v601 = vpop.f32.mrf.mxu0
        %v602 = vadd.f32 0.0, %v601
        %v603 = vpop.f32.mrf.mxu0
        %v604 = vpop.f32.mrf.mxu0
        %605 = vdwg.mxu0
        %v606 = vld [vmem:[%s2] sm:$0xf]
        %v607 = vld [vmem:[%s2 + $0x4] sm:$0xf]
        %v608 = vld [vmem:[%s2 + $0x8] sm:$0xf]
        %v609 = vld [vmem:[%s2 + $0xc] sm:$0xf]
        %v610 = vpack.c.bf16 %v600, %v600
        %v611 = vpack.c.bf16 %v602, %v602
        %v612 = vld [vmem:[%s3] sm:$0xf]
        %v613 = vld [vmem:[%s3 + $0x4] sm:$0xf]
        %v614 = vld [vmem:[%s3 + $0x8] sm:$0xf]
        %v615 = vld [vmem:[%s3 + $0xc] sm:$0xf]
        %v620 = vunpack.c.l.b16 %v612
        %v621 = vunpack.c.l.b16 %v613
        %v622 = vunpack.c.l.b16 %v614
        %v623 = vunpack.c.l.b16 %v615
        %v624 = vpack.c.b16 %v621, %v620
        %v625 = vpack.c.b16 %v623, %v622
        %v626 = vrot.slane %v301, 2
        %v627 = vrot.slane %v302, 2
        %vm628 = vcmask 97280
        %v630 = vsel %vm628, %v624, 0
        %v633 = vsel %vm628, %v625, 0
        %v636 = vsel %vm532, %v626, 0
        %v639 = vsel %vm532, %v627, 0
        %641 = vmatprep.subr.bf16.mxu0 0
        %642 = vmatpush1.bf16.msra.mxu0 0
        %643 = vmatprep.subr.bf16.mxu0 0
        %644 = vmatpush1.bf16.msra.mxu0 0
        %645 = vmatprep.subr.bf16.mxu0 0
        %646 = vmatpush1.bf16.msra.mxu0 0
        %647 = vmatprep.subr.bf16.mxu0 0
        %648 = vmatpush1.bf16.msra.mxu0 0
        %649 = vmatprep.subr.bf16.mxu0 0
        %650 = vmatpush1.bf16.msra.mxu0 0
        %651 = vmatprep.subr.bf16.mxu0 0
        %652 = vmatpush1.bf16.msra.mxu0 0
        %653 = vmatprep.subr.bf16.mxu0 0
        %654 = vmatpush1.bf16.msra.mxu0 0
        %655 = vmatprep.subr.bf16.mxu0 %v639
        %656 = vmatpush1.bf16.msra.mxu0 %v636
        %657 = vmatprep.subr.bf16.mxu0 0
        %658 = vmatpush2.bf16.msra.mxu0 0
        %659 = vmatprep.subr.bf16.mxu0 0
        %660 = vmatpush2.bf16.msra.mxu0 0
        %661 = vmatprep.subr.bf16.mxu0 0
        %662 = vmatpush2.bf16.msra.mxu0 0
        %663 = vmatprep.subr.bf16.mxu0 0
        %664 = vmatpush2.bf16.msra.mxu0 0
        %665 = vmatprep.subr.bf16.mxu0 0
        %666 = vmatpush2.bf16.msra.mxu0 0
        %667 = vmatprep.subr.bf16.mxu0 0
        %668 = vmatpush2.bf16.msra.mxu0 0
        %669 = vmatprep.subr.bf16.mxu0 0
        %670 = vmatpush2.bf16.msra.mxu0 0
        %671 = vmatprep.subr.bf16.mxu0 0
        %672 = vmatpush2.bf16.msra.mxu0 0
        %673 = vmatprep.mubr.bf16.mxu0 0
        %674 = vmatmul.mubr.bf16.gmra.mxu0 %v630
        %v675 = vpop.f32.mrf.mxu0
        %v676 = vadd.f32 0.0, %v675
        %v677 = vpop.f32.mrf.mxu0
        %v678 = vadd.f32 0.0, %v677
        %v679 = vpop.f32.mrf.mxu0
        %v680 = vadd.f32 0.0, %v679
        %v681 = vpop.f32.mrf.mxu0
        %v682 = vadd.f32 0.0, %v681
        %683 = vmatprep.mubr.bf16.mxu0 0
        %684 = vmatmul.mubr.bf16.gmra.mxu0 %v633
        %v685 = vpop.f32.mrf.mxu0
        %v686 = vadd.f32 0.0, %v685
        %v687 = vpop.f32.mrf.mxu0
        %v688 = vadd.f32 0.0, %v687
        %v689 = vpop.f32.mrf.mxu0
        %v690 = vadd.f32 0.0, %v689
        %v691 = vpop.f32.mrf.mxu0
        %v692 = vadd.f32 0.0, %v691
        %693 = vdwg.mxu0
        %v698 = vunpack.c.l.b16 %v606
        %v699 = vunpack.c.l.b16 %v607
        %v700 = vunpack.c.l.b16 %v608
        %v701 = vunpack.c.l.b16 %v609
        %v702 = vpack.c.b16 %v699, %v698
        %v703 = vpack.c.b16 %v701, %v700
        %vm704 = vcmask 31744
        %v706 = vsel %vm704, %v702, 0
        %v709 = vsel %vm704, %v703, 0
        %v712 = vsel %vm520, %v610, 0
        %v715 = vsel %vm520, %v611, 0
        %717 = vmatprep.subr.bf16.mxu0 0
        %718 = vmatpush1.bf16.msra.mxu0 0
        %719 = vmatprep.subr.bf16.mxu0 0
        %720 = vmatpush1.bf16.msra.mxu0 0
        %721 = vmatprep.subr.bf16.mxu0 0
        %722 = vmatpush1.bf16.msra.mxu0 0
        %723 = vmatprep.subr.bf16.mxu0 0
        %724 = vmatpush1.bf16.msra.mxu0 0
        %725 = vmatprep.subr.bf16.mxu0 0
        %726 = vmatpush1.bf16.msra.mxu0 0
        %727 = vmatprep.subr.bf16.mxu0 0
        %728 = vmatpush1.bf16.msra.mxu0 0
        %729 = vmatprep.subr.bf16.mxu0 0
        %730 = vmatpush1.bf16.msra.mxu0 0
        %731 = vmatprep.subr.bf16.mxu0 %v715
        %732 = vmatpush1.bf16.msra.mxu0 %v712
        %733 = vmatprep.subr.bf16.mxu0 0
        %734 = vmatpush2.bf16.msra.mxu0 0
        %735 = vmatprep.subr.bf16.mxu0 0
        %736 = vmatpush2.bf16.msra.mxu0 0
        %737 = vmatprep.subr.bf16.mxu0 0
        %738 = vmatpush2.bf16.msra.mxu0 0
        %739 = vmatprep.subr.bf16.mxu0 0
        %740 = vmatpush2.bf16.msra.mxu0 0
        %741 = vmatprep.subr.bf16.mxu0 0
        %742 = vmatpush2.bf16.msra.mxu0 0
        %743 = vmatprep.subr.bf16.mxu0 0
        %744 = vmatpush2.bf16.msra.mxu0 0
        %745 = vmatprep.subr.bf16.mxu0 0
        %746 = vmatpush2.bf16.msra.mxu0 0
        %747 = vmatprep.subr.bf16.mxu0 0
        %748 = vmatpush2.bf16.msra.mxu0 0
        %749 = vmatprep.mubr.bf16.mxu0 0
        %750 = vmatmul.mubr.bf16.gmra.mxu0 %v706
        %v751 = vpop.f32.mrf.mxu0
        %v752 = vadd.f32 %v676, %v751
        %v753 = vpop.f32.mrf.mxu0
        %v754 = vadd.f32 %v678, %v753
        %v755 = vpop.f32.mrf.mxu0
        %v756 = vadd.f32 %v680, %v755
        %v757 = vpop.f32.mrf.mxu0
        %v758 = vadd.f32 %v682, %v757
        %759 = vmatprep.mubr.bf16.mxu0 0
        %760 = vmatmul.mubr.bf16.gmra.mxu0 %v709
        %v761 = vpop.f32.mrf.mxu0
        %v762 = vadd.f32 %v686, %v761
        %v763 = vpop.f32.mrf.mxu0
        %v764 = vadd.f32 %v688, %v763
        %v765 = vpop.f32.mrf.mxu0
        %v766 = vadd.f32 %v690, %v765
        %v767 = vpop.f32.mrf.mxu0
        %v768 = vadd.f32 %v692, %v767
        %769 = vdwg.mxu0
        %v770 = vld [vmem:[%s4] sm:$0xff]
        %v771 = vld [vmem:[%s4 + $0x8] sm:$0xff]
        %v772 = vld [vmem:[%s4 + $0x10] sm:$0xff]
        %v773 = vld [vmem:[%s4 + $0x18] sm:$0xff]
        %775 = vset.pattern.permute.xlu0 0
        %776 = vperm.xlu0 %775, %v770
        %v777 = vpop.permute.xlu0 %776
        %780 = vset.pattern.permute.xlu0 0
        %781 = vperm.xlu0 %780, %v771
        %v782 = vpop.permute.xlu0 %781
        %785 = vset.pattern.permute.xlu0 0
        %786 = vperm.xlu0 %785, %v772
        %v787 = vpop.permute.xlu0 %786
        %790 = vset.pattern.permute.xlu0 0
        %791 = vperm.xlu0 %790, %v773
        %v792 = vpop.permute.xlu0 %791
        %v794 = vadd.f32 %v752, %v777
        %v795 = vadd.f32 %v754, %v777
        %v796 = vadd.f32 %v756, %v782
        %v797 = vadd.f32 %v758, %v782
        %v798 = vadd.f32 %v762, %v787
        %v799 = vadd.f32 %v764, %v787
        %v800 = vadd.f32 %v766, %v792
        %v801 = vadd.f32 %v768, %v792
        %v802 = vxor.u32 %v794, 2147483648
        %v803 = vxor.u32 %v795, 2147483648
        %v804 = vxor.u32 %v796, 2147483648
        %v805 = vxor.u32 %v797, 2147483648
        %v806 = vxor.u32 %v798, 2147483648
        %v807 = vxor.u32 %v799, 2147483648
        %v808 = vxor.u32 %v800, 2147483648
        %v809 = vxor.u32 %v801, 2147483648
        %v810 = vmul.f32 %v802, 1.442695
        %v811 = vpow.pop %v810
        %v812 = vmul.f32 %v803, 1.442695
        %v813 = vpow.pop %v812
        %v814 = vmul.f32 %v804, 1.442695
        %v815 = vpow.pop %v814
        %v816 = vmul.f32 %v805, 1.442695
        %v817 = vpow.pop %v816
        %v818 = vmul.f32 %v806, 1.442695
        %v819 = vpow.pop %v818
        %v820 = vmul.f32 %v807, 1.442695
        %v821 = vpow.pop %v820
        %v822 = vmul.f32 %v808, 1.442695
        %v823 = vpow.pop %v822
        %v824 = vmul.f32 %v809, 1.442695
        %v825 = vpow.pop %v824
        %v826 = vadd.f32 %v811, 1.0
        %v827 = vadd.f32 %v813, 1.0
        %v828 = vadd.f32 %v815, 1.0
        %v829 = vadd.f32 %v817, 1.0
        %v830 = vadd.f32 %v819, 1.0
        %v831 = vadd.f32 %v821, 1.0
        %v832 = vadd.f32 %v823, 1.0
        %v833 = vadd.f32 %v825, 1.0
        %v834 = vrcp.pop %v826
        %v835 = vmul.f32 1.0, %v834
        %v836 = vrcp.pop %v827
        %v837 = vmul.f32 1.0, %v836
        %v838 = vrcp.pop %v828
        %v839 = vmul.f32 1.0, %v838
        %v840 = vrcp.pop %v829
        %v841 = vmul.f32 1.0, %v840
        %v842 = vrcp.pop %v830
        %v843 = vmul.f32 1.0, %v842
        %v844 = vrcp.pop %v831
        %v845 = vmul.f32 1.0, %v844
        %v846 = vrcp.pop %v832
        %v847 = vmul.f32 1.0, %v846
        %v848 = vrcp.pop %v833
        %v849 = vmul.f32 1.0, %v848
        %v850 = vmul.f32 %v794, %v835
        %v851 = vmul.f32 %v795, %v837
        %v852 = vmul.f32 %v796, %v839
        %v853 = vmul.f32 %v797, %v841
        %v854 = vmul.f32 %v798, %v843
        %v855 = vmul.f32 %v799, %v845
        %v856 = vmul.f32 %v800, %v847
        %v857 = vmul.f32 %v801, %v849
        %v858 = vpack.c.bf16 %v850, %v850
        %v859 = vpack.c.bf16 %v851, %v851
        %v860 = vld [vmem:[%s5] sm:$0xf]
        %863 = vrot.lane.b32.xlu0 %v858, 17
        %v864 = vpop.permute.xlu0 %863
        %865 = vrot.lane.b32.xlu0 %v859, 17
        %v866 = vpop.permute.xlu0 %865
        %v867 = vsel %vm310, %v864, %v866
        %v870 = vsel %vm313, 0, %v864
        %v873 = vsel %vm313, %v866, 0
        %v875 = vsel %vm335, %v870, 0
        %v876 = vsel %vm336, %v867, 0
        %v877 = vsel %vm359, %v870, 0
        %v878 = vsel %vm360, %v867, 0
        %v879 = vsel %vm361, %v873, 0
        %v880 = vsel %vm371, %v870, 0
        %v881 = vsel %vm372, %v867, 0
        %v882 = vsel %vm373, %v873, 0
        %v883 = vsel %vm383, %v870, 0
        %v884 = vsel %vm384, %v867, 0
        %v885 = vsel %vm385, %v873, 0
        %v886 = vsel %vm395, %v870, 0
        %v887 = vsel %vm396, %v867, 0
        %v888 = vsel %vm397, %v873, 0
        %v889 = vsel %vm407, %v870, 0
        %v890 = vsel %vm408, %v867, 0
        %v891 = vsel %vm409, %v873, 0
        %v894 = vrot.slane %v870, 4
        %v895 = vrot.slane %v867, 4
        %v896 = vrot.slane %v873, 4
        %897 = vrot.lane.b32.xlu0 %v894, 127
        %v898 = vpop.permute.xlu0 %897
        %899 = vrot.lane.b32.xlu0 %v895, 127
        %v900 = vpop.permute.xlu0 %899
        %901 = vrot.lane.b32.xlu0 %v896, 127
        %v902 = vpop.permute.xlu0 %901
        %v903 = vsel %vm424, %v898, %v900
        %v904 = vsel %vm424, %v900, %v902
        %908 = vrot.lane.b32.xlu0 %v877, 126
        %v909 = vpop.permute.xlu0 %908
        %910 = vrot.lane.b32.xlu0 %v878, 126
        %v911 = vpop.permute.xlu0 %910
        %912 = vrot.lane.b32.xlu0 %v879, 126
        %v913 = vpop.permute.xlu0 %912
        %v914 = vsel %vm439, %v909, %v911
        %v915 = vsel %vm439, %v911, %v913
        %v919 = vrot.slane %v880, 4
        %v920 = vrot.slane %v881, 4
        %v921 = vrot.slane %v882, 4
        %922 = vrot.lane.b32.xlu0 %v919, 112
        %v923 = vpop.permute.xlu0 %922
        %924 = vrot.lane.b32.xlu0 %v920, 112
        %v925 = vpop.permute.xlu0 %924
        %926 = vrot.lane.b32.xlu0 %v921, 112
        %v927 = vpop.permute.xlu0 %926
        %v928 = vsel %vm454, %v923, %v925
        %v929 = vsel %vm454, %v925, %v927
        %930 = vrot.lane.b32.xlu0 %v870, 111
        %v931 = vpop.permute.xlu0 %930
        %932 = vrot.lane.b32.xlu0 %v867, 111
        %v933 = vpop.permute.xlu0 %932
        %934 = vrot.lane.b32.xlu0 %v873, 111
        %v935 = vpop.permute.xlu0 %934
        %v936 = vsel %vm463, %v931, %v933
        %v937 = vsel %vm463, %v933, %v935
        %v941 = vrot.slane %v883, 4
        %v942 = vrot.slane %v884, 4
        %v943 = vrot.slane %v885, 4
        %944 = vrot.lane.b32.xlu0 %v941, 110
        %v945 = vpop.permute.xlu0 %944
        %946 = vrot.lane.b32.xlu0 %v942, 110
        %v947 = vpop.permute.xlu0 %946
        %948 = vrot.lane.b32.xlu0 %v943, 110
        %v949 = vpop.permute.xlu0 %948
        %v950 = vsel %vm478, %v945, %v947
        %v951 = vsel %vm478, %v947, %v949
        %955 = vrot.lane.b32.xlu0 %v886, 96
        %v956 = vpop.permute.xlu0 %955
        %957 = vrot.lane.b32.xlu0 %v887, 96
        %v958 = vpop.permute.xlu0 %957
        %959 = vrot.lane.b32.xlu0 %v888, 96
        %v960 = vpop.permute.xlu0 %959
        %v961 = vsel %vm493, %v956, %v958
        %v962 = vsel %vm493, %v958, %v960
        %963 = vrot.lane.b32.xlu0 %v894, 95
        %v964 = vpop.permute.xlu0 %963
        %965 = vrot.lane.b32.xlu0 %v895, 95
        %v966 = vpop.permute.xlu0 %965
        %967 = vrot.lane.b32.xlu0 %v896, 95
        %v968 = vpop.permute.xlu0 %967
        %v969 = vsel %vm505, %v964, %v966
        %v970 = vsel %vm505, %v966, %v968
        %974 = vrot.lane.b32.xlu0 %v889, 94
        %v975 = vpop.permute.xlu0 %974
        %976 = vrot.lane.b32.xlu0 %v890, 94
        %v977 = vpop.permute.xlu0 %976
        %978 = vrot.lane.b32.xlu0 %v891, 94
        %v979 = vpop.permute.xlu0 %978
        %v980 = vsel %vm517, %v975, %v977
        %v981 = vsel %vm517, %v977, %v979
        %v984 = vsel %vm527, %v875, %v903
        %v988 = vsel %vm527, %v876, %v904
        %v992 = vsel %vm527, %v914, %v928
        %v996 = vsel %vm527, %v915, %v929
        %v1000 = vsel %vm527, %v936, %v950
        %v1004 = vsel %vm527, %v937, %v951
        %v1008 = vsel %vm527, %v961, %v969
        %v1012 = vsel %vm527, %v962, %v970
        %vm1014 = vcmask 588800
        %v1016 = vsel %vm1014, %v860, 0
        %v1019 = vsel %vm527, %v980, 0
        %v1022 = vsel %vm527, %v981, 0
        %1024 = vmatprep.subr.bf16.mxu0 0
        %1025 = vmatpush1.bf16.msra.mxu0 0
        %1026 = vmatprep.subr.bf16.mxu0 0
        %1027 = vmatpush1.bf16.msra.mxu0 0
        %1028 = vmatprep.subr.bf16.mxu0 0
        %1029 = vmatpush1.bf16.msra.mxu0 0
        %1030 = vmatprep.subr.bf16.mxu0 %v1022
        %1031 = vmatpush1.bf16.msra.mxu0 %v1019
        %1032 = vmatprep.subr.bf16.mxu0 %v1012
        %1033 = vmatpush1.bf16.msra.mxu0 %v1008
        %1034 = vmatprep.subr.bf16.mxu0 %v1004
        %1035 = vmatpush1.bf16.msra.mxu0 %v1000
        %1036 = vmatprep.subr.bf16.mxu0 %v996
        %1037 = vmatpush1.bf16.msra.mxu0 %v992
        %1038 = vmatprep.subr.bf16.mxu0 %v988
        %1039 = vmatpush1.bf16.msra.mxu0 %v984
        %1040 = vmatprep.subr.bf16.mxu0 0
        %1041 = vmatpush2.bf16.msra.mxu0 0
        %1042 = vmatprep.subr.bf16.mxu0 0
        %1043 = vmatpush2.bf16.msra.mxu0 0
        %1044 = vmatprep.subr.bf16.mxu0 0
        %1045 = vmatpush2.bf16.msra.mxu0 0
        %1046 = vmatprep.subr.bf16.mxu0 0
        %1047 = vmatpush2.bf16.msra.mxu0 0
        %1048 = vmatprep.subr.bf16.mxu0 0
        %1049 = vmatpush2.bf16.msra.mxu0 0
        %1050 = vmatprep.subr.bf16.mxu0 0
        %1051 = vmatpush2.bf16.msra.mxu0 0
        %1052 = vmatprep.subr.bf16.mxu0 0
        %1053 = vmatpush2.bf16.msra.mxu0 0
        %1054 = vmatprep.subr.bf16.mxu0 0
        %1055 = vmatpush2.bf16.msra.mxu0 0
        %1056 = vmatprep.mubr.bf16.mxu0 0
        %1057 = vmatmul.mubr.bf16.gmra.mxu0 %v1016
        %v1058 = vpop.f32.mrf.mxu0
        %v1059 = vadd.f32 0.0, %v1058
        %v1060 = vpop.f32.mrf.mxu0
        %v1061 = vadd.f32 0.0, %v1060
        %v1062 = vpop.f32.mrf.mxu0
        %v1063 = vpop.f32.mrf.mxu0
        %1064 = vdwg.mxu0
        %1065 = vst [vmem:[%s257] sm:$0xff] %v1059
        %1066 = vst [vmem:[%s257 + $0x8] sm:$0xff] %v1061
        %1067 = vst [vmem:[%s257 + $0x10] sm:$0xff] %v852
        %1068 = vst [vmem:[%s257 + $0x18] sm:$0xff] %v853
        %1069 = vst [vmem:[%s257 + $0x20] sm:$0xff] %v854
        %1070 = vst [vmem:[%s257 + $0x28] sm:$0xff] %v855
        %1071 = vst [vmem:[%s257 + $0x30] sm:$0xff] %v856
        %1072 = vst [vmem:[%s257 + $0x38] sm:$0xff] %v857
        %s1073 = sand.u32 %s160, 1
        %s1074 = scalar_lea.sflag [#allocation4], %s1073
        %s1075 = sand.u32 %s160, 1
        %s1076 = smul.addr %s1075, 64
        %s1077 = scalar_lea.vmem [#allocation5], %s1076
        // Predicated region
        $region49: #{tpu_custom_call.1} parent=43 // pred_check
          %p1078 = pneg %p170
        $region50: #{tpu_custom_call.1} parent=43 // pred_check_branch
          %1080 = sbr.rel (%p1078) target = $region52
        $region51: #{tpu_custom_call.1} parent=43 // pred_region
          %s1082 = ssub.s32 1024, 1024
          %1083 = vsyncadd %s1074, %s1082
          %s1084 = smul.addr %s21, 8
          %s1085 = smul.addr %s1084, 128
          %s1086 = scalar_lea.hbm %s6, %s1085
          %s1087 = sshll.u32 %s1077, 4
          %s1088 = int_to_ptr.vmem [resolvable:$true] %s1087
          %1093 = dma.vmem_to_hbm [thread:$0]  %s1088, 1024, %s1086, %s1074, 256, 256, 16
        $region52: #{tpu_custom_call.1} parent=43 // pred_fallthru
          _
      $region44: #{tpu_custom_call.1} parent=5 // pred_fallthru
        _
      %p1094 = scmp.le.s32.totalorder 2, %s16
      // Predicated region
      $region53: #{tpu_custom_call.1} parent=5 // pred_check
        %p1095 = pneg %p1094
      $region54: #{tpu_custom_call.1} parent=5 // pred_check_branch
        %1097 = sbr.rel (%p1095) target = $region56
      $region55: #{tpu_custom_call.1} parent=5 // pred_region
        %s1098 = ssub.s32 %s16, 2
        // Predicated region
        $region57: #{tpu_custom_call.1} parent=55 // pred_check
          %p1099 = pneg %p176
        $region58: #{tpu_custom_call.1} parent=55 // pred_check_branch
          %1101 = sbr.rel (%p1099) target = $region60
        $region59: #{tpu_custom_call.1} parent=55 // pred_region
          %s1102 = sand.u32 %s161, 1
          %s1103 = scalar_lea.sflag [#allocation4], %s1102
          %s1104 = sand.u32 %s161, 1
          %s1105 = smul.addr %s1104, 64
          %s1106 = scalar_lea.vmem [#allocation5], %s1105
          %1107 = dma.done %s1103, 1024
        $region60: #{tpu_custom_call.1} parent=55 // pred_fallthru
          _
      $region56: #{tpu_custom_call.1} parent=5 // pred_fallthru
        _
    $region6: #{tpu_custom_call.1} parent=1 // loop_footer
      %s20 = sadd.s32 1, %s16
    $region7: #{tpu_custom_call.1} parent=1 // loop_footer_branch
      %15 = sbr.rel target = $region3
    $region8: #{tpu_custom_call.1} parent=1 // loop_exit
      _
    %1108 = vsyncpa [#allocation3], 1
    %s1109 = scalar_lea.sflag [#allocation3], 1
    %1110 = vsyncpa %s1109, 1
    %1111 = vsyncpa [#allocation4], 1
    %s1112 = scalar_lea.sflag [#allocation4], 1
    %1113 = vsyncpa %s1112, 1

</llo_original>
